<compile_context>
chip_gen: v7x
topology: tpu7x:2x2x1
jax: 0.10.0
libtpu: 0.0.40
codegen_flags: <defaults>
</compile_context>

<pallas_src>
import jax
import jax.numpy as jnp
from jax.experimental import pallas as pl
from jax.experimental.pallas import tpu as pltpu

_LANE = 128
_SUBLANE = 8
_TARGET_TILE_BYTES = 4 * 1024 * 1024   # ~4 MiB per VMEM buffer (dtype-aware row count)
_VMEM_LIMIT_BYTES = 32 * 1024 * 1024   # raise v5e's 16 MiB default; <= physical on all gens


def _stochastic_depth_kernel(scale_ref, x_ref, o_ref):
    # scale_ref: VMEM (tile_r, 1) f32 per-row scale (keep/p), lane-broadcast.
    # x_ref/o_ref: VMEM (tile_r, 128) lane-dense tiles (full unmasked stores).
    o_ref[...] = (x_ref[...].astype(jnp.float32) * scale_ref[...]).astype(o_ref.dtype)


def stochastic_depth(x, key, p: float = 0.5, training: bool = True):
    """Pallas implementation of StochasticDepth.forward (NCHW input)."""
    if not training:
        return x
    if p <= 0.0:
        # TODO(synk): p == 0 divides by zero in the PyTorch reference too.
        raise ValueError("p must be > 0")

    orig_shape = x.shape
    B = orig_shape[0]
    F = 1
    for d in orig_shape[1:]:
        F *= d

    # RNG in plain JAX (matches torch.rand(B,1,1,1) < p), folded with 1/p so
    # the kernel is a single broadcast multiply.
    u = jax.random.uniform(key, (B,), dtype=jnp.float32)
    scale = (u < p).astype(jnp.float32) / jnp.float32(p)

    # Collapse (batch, features) into rows of 128 lanes.
    rows = pl.cdiv(F, _LANE)            # rows per batch element
    f_pad = rows * _LANE
    total_rows = B * rows

    x_flat = x.reshape(B, F)
    if f_pad != F:
        # TODO(synk): unaligned feature counts still need a pad + slice round trip.
        x_flat = jnp.pad(x_flat, ((0, 0), (0, f_pad - F)))
    x2 = x_flat.reshape(total_rows, _LANE)

    # Per-row f32 scale column: 1/128th of x's f32 traffic, negligible.
    scale_rows = jnp.repeat(scale, rows).reshape(total_rows, 1)

    # dtype-aware tile: ~_TARGET_TILE_BYTES per buffer, row count multiple of 8.
    itemsize = jnp.dtype(x.dtype).itemsize
    max_rows = max(_SUBLANE,
                   (_TARGET_TILE_BYTES // (_LANE * itemsize)) // _SUBLANE * _SUBLANE)
    tile_r = total_rows if total_rows <= max_rows else max_rows
    n_tiles = pl.cdiv(total_rows, tile_r)   # ragged last block masked by Pallas

    out2 = pl.pallas_call(
        _stochastic_depth_kernel,
        out_shape=jax.ShapeDtypeStruct((total_rows, _LANE), x.dtype),
        grid=(n_tiles,),
        in_specs=[
            pl.BlockSpec((tile_r, 1), lambda i: (i, 0)),       # per-row scale
            pl.BlockSpec((tile_r, _LANE), lambda i: (i, 0)),   # x tile
        ],
        out_specs=pl.BlockSpec((tile_r, _LANE), lambda i: (i, 0)),
        compiler_params=pltpu.CompilerParams(
            dimension_semantics=("parallel",),
            vmem_limit_bytes=_VMEM_LIMIT_BYTES),
        # TODO(synk): if callers can donate x, input_output_aliases={1: 0}
        # would reuse its HBM buffer; omitted since callers may still hold x.
    )(scale_rows, x2)

    if f_pad != F:
        out = out2.reshape(B, f_pad)[:, :F]
    else:
        out = out2
    return out.reshape(orig_shape)


if __name__ == "__main__":
    key = jax.random.PRNGKey(0)
    kx, kmask = jax.random.split(key)

    B, C, H, W = 2, 4, 16, 16
    x = jax.random.normal(kx, (B, C, H, W), dtype=jnp.float32)
    p = 0.5

    # Training mode: run the Pallas kernel (aligned path: F % 128 == 0).
    out = stochastic_depth(x, kmask, p=p, training=True)
    out = jax.block_until_ready(out)

    # Reference check in plain JAX (same RNG draw).
    u = jax.random.uniform(kmask, (B,), dtype=jnp.float32)
    keep = (u < p).astype(jnp.float32).reshape(B, 1, 1, 1)
    ref = x / p * keep
    assert out.shape == x.shape and out.dtype == x.dtype
    assert jnp.allclose(out, ref, atol=1e-6), "mismatch vs reference (aligned)"

    # Unaligned feature count exercises the pad/slice fallback path.
    xu = jax.random.normal(kx, (3, 3, 5, 7), dtype=jnp.float32)
    out_u = jax.block_until_ready(stochastic_depth(xu, kmask, p=p, training=True))
    uu = jax.random.uniform(kmask, (3,), dtype=jnp.float32)
    ref_u = xu / p * (uu < p).astype(jnp.float32).reshape(3, 1, 1, 1)
    assert out_u.shape == xu.shape and out_u.dtype == xu.dtype
    assert jnp.allclose(out_u, ref_u, atol=1e-6), "mismatch vs reference (unaligned)"

    # Eval mode: identity.
    out_eval = stochastic_depth(x, kmask, p=p, training=False)
    assert jnp.array_equal(out_eval, x)

    print("KERNEL_OK")
</pallas_src>

<mosaic_0001>
module attributes {stable_mosaic.version = 11 : i64} {
  func.func @_stochastic_depth_kernel(%arg0: i32, %arg1: memref<16x1xf32, #tpu.memory_space<vmem>>, %arg2: memref<16x128xf32, #tpu.memory_space<vmem>>, %arg3: memref<16x128xf32, #tpu.memory_space<vmem>>) attributes {dimension_semantics = [#tpu.dimension_semantics<parallel>], iteration_bounds = array<i64: 1>, scalar_prefetch = 0 : i64, scratch_operands = 0 : i64, tpu.core_type = #tpu.core_type<tc>, window_params = [{transform_indices = @transform_0, window_bounds = array<i64: 16, 1>}, {transform_indices = @transform_1, window_bounds = array<i64: 16, 128>}, {transform_indices = @transform_2, window_bounds = array<i64: 16, 128>}]} {
    %c0 = arith.constant 0 : index
    %c0_0 = arith.constant 0 : index
    %0 = vector.load %arg2[%c0, %c0_0] : memref<16x128xf32, #tpu.memory_space<vmem>>, vector<16x128xf32>
    %c0_1 = arith.constant 0 : index
    %c0_2 = arith.constant 0 : index
    %1 = vector.load %arg1[%c0_1, %c0_2] : memref<16x1xf32, #tpu.memory_space<vmem>>, vector<16x1xf32>
    %2 = vector.broadcast %1 : vector<16x1xf32> to vector<16x128xf32>
    %3 = arith.mulf %0, %2 : vector<16x128xf32>
    %c0_3 = arith.constant 0 : index
    %c0_4 = arith.constant 0 : index
    %4 = vector.load %arg3[%c0_3, %c0_4] : memref<16x128xf32, #tpu.memory_space<vmem>>, vector<16x128xf32>
    tpu.vector_store %arg3[%c0_3, %c0_4], %3 {strides = array<i32>} : memref<16x128xf32, #tpu.memory_space<vmem>>, vector<16x128xf32>,
    return
  }
  func.func @transform_0(%arg0: i32) -> (i32, i32) {
    %c0_i32 = arith.constant 0 : i32
    %c0_i32_0 = arith.constant 0 : i32
    return %arg0, %c0_i32 : i32, i32
  }
  func.func @transform_1(%arg0: i32) -> (i32, i32) {
    %c0_i32 = arith.constant 0 : i32
    %c0_i32_0 = arith.constant 0 : i32
    return %arg0, %c0_i32 : i32, i32
  }
  func.func @transform_2(%arg0: i32) -> (i32, i32) {
    %c0_i32 = arith.constant 0 : i32
    %c0_i32_0 = arith.constant 0 : i32
    return %arg0, %c0_i32 : i32, i32
  }
}

</mosaic_0001>

<llo_original>
// kernel: tpu_custom_call.1
$region0: #{tpu_custom_call.1}
  #allocation0 [shape = 'u32[]', space=smem, size = 0x4, offset = 0x4, fixed_abs, tag = 'smem constant byte address 0x4 - core index']
  #allocation1 [shape = 'u32[144,128]{1,0:T(1,128)}', space=vmem, size = 0x12000, scoped, tag = 'internal scratch']
  %s0 = inlined_call_operand.vmem [shape: f32[16,1], index: 0, kind: input, shape index: {}]
  %s1 = inlined_call_operand.vmem [shape: f32[16,128], index: 1, kind: input, shape index: {}]
  %s2 = inlined_call_operand.hbm [shape: f32[16,128], index: 2, kind: output, shape index: {}]
  %s3 = sld [smem:[#allocation0]]
  $region18: #{tpu_custom_call.1} parent=0
    _
  %s5 = ssub.s32 1, %s3
  %s6 = scalar_select 0, %s5, %s3
  $region1: #{tpu_custom_call.1} parent=0
    #allocation2 [shape = 'u8[8192]{0}', space=vmem, size = 0x2000, scoped, tag = 'output window, operand 0, single buffered']
    #allocation3 [shape = 's32[1]{0}', space=sflag, size = 0x4, scoped, tag = 'scoped memory for tpu_custom_call.1']
    %7 = vsyncpa [#allocation3], 0
    // Predicated region
    $region2: #{tpu_custom_call.1} parent=1 // pred_check
      _
    $region3: #{tpu_custom_call.1} parent=1 // pred_check_branch
      %9 = sbr.rel (0) target = $region5
    $region4: #{tpu_custom_call.1} parent=1 // pred_region
      _
    $region5: #{tpu_custom_call.1} parent=1 // pred_fallthru
      _
    // Predicated region
    $region6: #{tpu_custom_call.1} parent=1 // pred_check
      _
    $region7: #{tpu_custom_call.1} parent=1 // pred_check_branch
      %11 = sbr.rel (0) target = $region9
    $region8: #{tpu_custom_call.1} parent=1 // pred_region
      _
    $region9: #{tpu_custom_call.1} parent=1 // pred_fallthru
      _
    %v12 = vld [vmem:[%s1] sm:$0xff]
    %v13 = vld [vmem:[%s1 + $0x8] sm:$0xff]
    %v14 = vld [vmem:[%s0] sm:$0xff]
    %v15 = vld [vmem:[%s0 + $0x8] sm:$0xff]
    %17 = vset.pattern.permute.xlu0 0
    %18 = vperm.xlu0 %17, %v14
    %v19 = vpop.permute.xlu0 %18
    %22 = vset.pattern.permute.xlu0 0
    %23 = vperm.xlu0 %22, %v15
    %v24 = vpop.permute.xlu0 %23
    %v26 = vmul.f32 %v12, %v19
    %v27 = vmul.f32 %v13, %v24
    %28 = vst [vmem:[#allocation2] sm:$0xff] %v26
    %29 = vst [vmem:[#allocation2 + $0x8] sm:$0xff] %v27
    // Predicated region
    $region10: #{tpu_custom_call.1} parent=1 // pred_check
      _
    $region11: #{tpu_custom_call.1} parent=1 // pred_check_branch
      %31 = sbr.rel (0) target = $region13
    $region12: #{tpu_custom_call.1} parent=1 // pred_region
      %s33 = ssub.s32 256, 256
      %34 = vsyncadd [#allocation3], %s33
      %s35 = sshll.u32 [#allocation2], 4
      %s36 = int_to_ptr.vmem [resolvable:$true] %s35
      %41 = dma.vmem_to_hbm [thread:$0]  %s36, 256, %s2, [#allocation3], 128, 128, 8
    $region13: #{tpu_custom_call.1} parent=1 // pred_fallthru
      _
    // Predicated region
    $region14: #{tpu_custom_call.1} parent=1 // pred_check
      _
    $region15: #{tpu_custom_call.1} parent=1 // pred_check_branch
      %43 = sbr.rel (0) target = $region17
    $region16: #{tpu_custom_call.1} parent=1 // pred_region
      %44 = dma.done [#allocation3], 256
    $region17: #{tpu_custom_call.1} parent=1 // pred_fallthru
      _
    %45 = vsyncpa [#allocation3], 1

</llo_original>
